<compile_context>
chip_gen: v7x
topology: tpu7x:2x2x1
jax: 0.10.0
libtpu: 0.0.40
codegen_flags: <defaults>
</compile_context>

<pallas_src>
import functools

import jax
import jax.numpy as jnp
from jax.experimental import pallas as pl
from jax.experimental.pallas import tpu as pltpu


def _round_up(x, m):
    return ((x + m - 1) // m) * m


def _cdiv(a, b):
    return -(-a // b)


def _vmem_capacity_bytes():
    """Per-core VMEM capacity; conservative default (v7x) if query fails."""
    try:
        info = pltpu.get_tpu_info()
        cap = getattr(info, "vmem_capacity_bytes", None)
        if cap:
            return int(cap)
    except Exception:
        pass
    return 64 << 20


def _plan_tiles(nc, h, w, hp, wp, itemsize, vmem_cap):
    """Pick (c_tile, grid_len, vmem_limit, fits) from the real per-step VMEM
    footprint: (8,128)-padded in/out planes *plus* the two (c_tile,1,1) f32
    parameter blocks, all double-buffered by the BlockSpec pipeline."""
    sub = {1: 32, 2: 16, 4: 8}.get(itemsize, 8)
    in_plane = _round_up(h, sub) * _round_up(w, 128) * itemsize
    out_plane = _round_up(hp, sub) * _round_up(wp, 128) * itemsize
    # Two f32 params; each channel's trailing (1,1) pads to one (8,128) tile.
    param_plane = 2 * (8 * 128 * 4)
    per_chan = 2 * (in_plane + out_plane + param_plane)     # x2: double-buffer

    budget = max(1, vmem_cap // 4)                          # data-block budget
    vmem_limit = min((vmem_cap * 3) // 4, 96 << 20)

    cap = max(1, budget // per_chan)
    c_tile = max(1, min(nc, cap))
    grid_len = _cdiv(nc, c_tile)

    # Prefer an even grid (both v7x TensorCores busy) when the channel-plane
    # padding it introduces is negligible.
    if nc >= 2 and grid_len % 2 == 1:
        cand = grid_len + 1 if grid_len > 1 else 2
        new_tile = _cdiv(nc, cand)
        if cand * new_tile - nc <= max(1, nc // 8):
            grid_len = cand
    c_tile = _cdiv(nc, grid_len)

    # Does even a single-channel block fit comfortably under the limit?
    single = 2 * (in_plane + out_plane + param_plane)
    fits = single <= (vmem_limit * 7) // 8
    return c_tile, grid_len, vmem_limit, fits


def _bn_pad_kernel(scale_ref, shift_ref, x_ref, o_ref, *, pad):
    # Per-block parameter vectors, shape (c_tile, 1, 1): one vector load each,
    # broadcast once over the (H, W) plane.  Pad value == shift (== BN(0)).
    scale = scale_ref[...]
    shift = shift_ref[...]

    x = x_ref[...]                                   # (c_tile, H, W)
    ct, h, w = x.shape
    y = (x.astype(jnp.float32) * scale + shift).astype(o_ref.dtype)

    if pad == 0:
        o_ref[...] = y
        return

    wp = w + 2 * pad
    pv = shift.astype(o_ref.dtype)                   # (c_tile, 1, 1)

    # Interior: written exactly once.
    o_ref[:, pl.ds(pad, h), pl.ds(pad, w)] = y

    # Border: four strips, each element written exactly once (top/bottom rows
    # span the full width; side strips cover only interior rows).
    row = jnp.broadcast_to(pv, (ct, pad, wp))
    o_ref[:, pl.ds(0, pad), :] = row
    o_ref[:, pl.ds(h + pad, pad), :] = row
    col = jnp.broadcast_to(pv, (ct, h, pad))
    o_ref[:, pl.ds(pad, h), pl.ds(0, pad)] = col
    o_ref[:, pl.ds(pad, h), pl.ds(w + pad, pad)] = col


def _affine_kernel(scale_ref, shift_ref, x_ref, o_ref):
    # Per-channel affine on an already zero-padded plane block (lane-dense).
    o_ref[...] = (x_ref[...].astype(jnp.float32) * scale_ref[...]
                  + shift_ref[...]).astype(o_ref.dtype)


def _bn_pad_large_plane(x_nc, scale_nc, shift_nc, pad, hp, wp,
                        vmem_cap, vmem_limit):
    """Fallback for planes too large to double-buffer whole: pad_value == BN(0),
    so zero-padding spatially (one extra XLA pass over x) and applying the
    per-channel affine elementwise reproduces BNAndPad exactly, while letting
    us tile H freely with fully lane-dense blocks."""
    nc, h, w = x_nc.shape
    itemsize = jnp.dtype(x_nc.dtype).itemsize
    sub = {1: 32, 2: 16, 4: 8}.get(itemsize, 8)

    xp = jnp.pad(x_nc, ((0, 0), (pad, pad), (pad, pad)))     # zeros -> BN -> pad value

    row_bytes = _round_up(wp, 128) * itemsize
    budget = max(1, vmem_cap // 4)
    h_cap = max(sub, ((budget // (4 * row_bytes)) // sub) * sub)  # in+out, x2 buf
    h_tile = min(_round_up(hp, sub), h_cap)
    n_h = _cdiv(hp, h_tile)
    hp_r = n_h * h_tile
    if hp_r != hp:
        xp = jnp.pad(xp, ((0, 0), (0, hp_r - hp), (0, 0)))

    scale3 = scale_nc.reshape(nc, 1, 1)
    shift3 = shift_nc.reshape(nc, 1, 1)

    out = pl.pallas_call(
        _affine_kernel,
        out_shape=jax.ShapeDtypeStruct((nc, hp_r, wp), x_nc.dtype),
        grid=(nc, n_h),
        in_specs=[
            pl.BlockSpec((1, 1, 1), lambda i, j: (i, 0, 0)),
            pl.BlockSpec((1, 1, 1), lambda i, j: (i, 0, 0)),
            pl.BlockSpec((1, h_tile, wp), lambda i, j: (i, j, 0)),
        ],
        out_specs=pl.BlockSpec((1, h_tile, wp), lambda i, j: (i, j, 0)),
        compiler_params=pltpu.CompilerParams(
            dimension_semantics=("parallel", "parallel"),
            vmem_limit_bytes=vmem_limit),
    )(scale3, shift3, xp)
    return out[:, :hp, :]


def bn_and_pad(x, weight, bias, running_mean, running_var, *,
               eps=1e-5, pad_pixels=1, affine=True):
    """Pallas implementation of BNAndPadLayer.forward (eval mode), NCHW."""
    N, C, H, W = x.shape
    p = int(pad_pixels)
    Hp, Wp = H + 2 * p, W + 2 * p

    mean32 = running_mean.astype(jnp.float32)
    inv_std = 1.0 / jnp.sqrt(running_var.astype(jnp.float32) + eps)
    if affine:
        scale = weight.astype(jnp.float32) * inv_std
        shift = bias.astype(jnp.float32) - mean32 * scale
    else:
        scale = inv_std
        shift = -mean32 * inv_std
    # Border pad value == shift == BN(0); no separate padv stream.

    NC = N * C
    itemsize = jnp.dtype(x.dtype).itemsize
    vmem_cap = _vmem_capacity_bytes()
    c_tile, grid_len, vmem_limit, fits = _plan_tiles(
        NC, H, W, Hp, Wp, itemsize, vmem_cap)

    x_nc = x.reshape(NC, H, W)                    # free reshape (contiguous)
    scale_nc = jnp.tile(scale, N)                 # per-(n, c) parameter vectors
    shift_nc = jnp.tile(shift, N)

    if not fits:
        out_nc = _bn_pad_large_plane(x_nc, scale_nc, shift_nc, p, Hp, Wp,
                                     vmem_cap, vmem_limit)
        return out_nc.reshape(N, C, Hp, Wp)

    nc_pad = c_tile * grid_len
    if nc_pad != NC:                              # ragged tail: pad a few planes
        extra = nc_pad - NC
        x_nc = jnp.pad(x_nc, ((0, extra), (0, 0), (0, 0)))
        scale_nc = jnp.pad(scale_nc, (0, extra))
        shift_nc = jnp.pad(shift_nc, (0, extra))

    scale3 = scale_nc.reshape(nc_pad, 1, 1)
    shift3 = shift_nc.reshape(nc_pad, 1, 1)

    param_spec = pl.BlockSpec((c_tile, 1, 1), lambda i: (i, 0, 0))

    out_nc = pl.pallas_call(
        functools.partial(_bn_pad_kernel, pad=p),
        out_shape=jax.ShapeDtypeStruct((nc_pad, Hp, Wp), x.dtype),
        grid=(grid_len,),
        in_specs=[
            param_spec,                                            # scale
            param_spec,                                            # shift (= pad value)
            pl.BlockSpec((c_tile, H, W), lambda i: (i, 0, 0)),     # x
        ],
        out_specs=pl.BlockSpec((c_tile, Hp, Wp), lambda i: (i, 0, 0)),
        compiler_params=pltpu.CompilerParams(
            dimension_semantics=("parallel",),
            vmem_limit_bytes=vmem_limit),
    )(scale3, shift3, x_nc)

    if nc_pad != NC:
        out_nc = out_nc[:NC]
    return out_nc.reshape(N, C, Hp, Wp)


def _reference(x, weight, bias, mean, var, eps, pad):
    inv = 1.0 / jnp.sqrt(var + eps)
    y = ((x - mean[None, :, None, None]) * (weight * inv)[None, :, None, None]
         + bias[None, :, None, None])
    padv = bias - mean * weight * inv
    out = jnp.pad(y, ((0, 0), (0, 0), (pad, pad), (pad, pad)))
    if pad > 0:
        pv = padv[None, :, None, None]
        out = out.at[:, :, :pad, :].set(pv)
        out = out.at[:, :, -pad:, :].set(pv)
        out = out.at[:, :, :, :pad].set(pv)
        out = out.at[:, :, :, -pad:].set(pv)
    return out


if __name__ == "__main__":
    key = jax.random.PRNGKey(0)
    k_x, k_m, k_v = jax.random.split(key, 3)

    N, C, H, W = 2, 4, 16, 16
    pad_pixels = 1
    eps = 1e-5

    x = jax.random.normal(k_x, (N, C, H, W), dtype=jnp.float32)

    # Deterministic, non-trivial BN parameters / running stats.
    weight = 1.0 + 0.1 * jnp.arange(C, dtype=jnp.float32)
    bias = 0.05 * jnp.arange(C, dtype=jnp.float32) - 0.1
    running_mean = 0.3 * jax.random.normal(k_m, (C,), dtype=jnp.float32)
    running_var = jnp.abs(jax.random.normal(k_v, (C,), dtype=jnp.float32)) + 0.5

    out = bn_and_pad(x, weight, bias, running_mean, running_var,
                     eps=eps, pad_pixels=pad_pixels, affine=True)
    out = jax.block_until_ready(out)

    ref = _reference(x, weight, bias, running_mean, running_var, eps, pad_pixels)
    assert out.shape == (N, C, H + 2 * pad_pixels, W + 2 * pad_pixels)
    assert jnp.allclose(out, ref, atol=1e-5, rtol=1e-5), "mismatch vs reference"

    print("KERNEL_OK")
</pallas_src>

<mosaic_0001>
module attributes {stable_mosaic.version = 11 : i64} {
  func.func @_bn_pad_kernel(%arg0: i32, %arg1: memref<4x1x1xf32, #tpu.memory_space<vmem>>, %arg2: memref<4x1x1xf32, #tpu.memory_space<vmem>>, %arg3: memref<4x16x16xf32, #tpu.memory_space<vmem>>, %arg4: memref<4x18x18xf32, #tpu.memory_space<vmem>>) attributes {dimension_semantics = [#tpu.dimension_semantics<parallel>], iteration_bounds = array<i64: 2>, scalar_prefetch = 0 : i64, scratch_operands = 0 : i64, tpu.core_type = #tpu.core_type<tc>, window_params = [{transform_indices = @transform_0, window_bounds = array<i64: 4, 1, 1>}, {transform_indices = @transform_1, window_bounds = array<i64: 4, 1, 1>}, {transform_indices = @transform_2, window_bounds = array<i64: 4, 16, 16>}, {transform_indices = @transform_3, window_bounds = array<i64: 4, 18, 18>}]} {
    %c0 = arith.constant 0 : index
    %c0_0 = arith.constant 0 : index
    %c0_1 = arith.constant 0 : index
    %0 = vector.load %arg1[%c0, %c0_0, %c0_1] : memref<4x1x1xf32, #tpu.memory_space<vmem>>, vector<4x1x1xf32>
    %c0_2 = arith.constant 0 : index
    %c0_3 = arith.constant 0 : index
    %c0_4 = arith.constant 0 : index
    %1 = vector.load %arg2[%c0_2, %c0_3, %c0_4] : memref<4x1x1xf32, #tpu.memory_space<vmem>>, vector<4x1x1xf32>
    %c0_5 = arith.constant 0 : index
    %c0_6 = arith.constant 0 : index
    %c0_7 = arith.constant 0 : index
    %2 = vector.load %arg3[%c0_5, %c0_6, %c0_7] : memref<4x16x16xf32, #tpu.memory_space<vmem>>, vector<4x16x16xf32>
    %3 = vector.broadcast %0 : vector<4x1x1xf32> to vector<4x16x16xf32>
    %4 = arith.mulf %2, %3 : vector<4x16x16xf32>
    %5 = vector.broadcast %1 : vector<4x1x1xf32> to vector<4x16x16xf32>
    %6 = arith.addf %4, %5 : vector<4x16x16xf32>
    %c0_8 = arith.constant 0 : index
    %c1 = arith.constant 1 : index
    %c1_9 = arith.constant 1 : index
    %7 = vector.load %arg4[%c0_8, %c1, %c1_9] : memref<4x18x18xf32, #tpu.memory_space<vmem>>, vector<4x16x16xf32>
    tpu.vector_store %arg4[%c0_8, %c1, %c1_9], %6 {strides = array<i32>} : memref<4x18x18xf32, #tpu.memory_space<vmem>>, vector<4x16x16xf32>,
    %8 = vector.shape_cast %1 : vector<4x1x1xf32> to vector<4x1x1xf32>
    %9 = vector.broadcast %8 : vector<4x1x1xf32> to vector<4x1x18xf32>
    %c0_10 = arith.constant 0 : index
    %c0_11 = arith.constant 0 : index
    %c0_12 = arith.constant 0 : index
    %10 = vector.load %arg4[%c0_10, %c0_11, %c0_12] : memref<4x18x18xf32, #tpu.memory_space<vmem>>, vector<4x1x18xf32>
    tpu.vector_store %arg4[%c0_10, %c0_11, %c0_12], %9 {strides = array<i32>} : memref<4x18x18xf32, #tpu.memory_space<vmem>>, vector<4x1x18xf32>,
    %c0_13 = arith.constant 0 : index
    %c17 = arith.constant 17 : index
    %c0_14 = arith.constant 0 : index
    %11 = vector.load %arg4[%c0_13, %c17, %c0_14] : memref<4x18x18xf32, #tpu.memory_space<vmem>>, vector<4x1x18xf32>
    tpu.vector_store %arg4[%c0_13, %c17, %c0_14], %9 {strides = array<i32>} : memref<4x18x18xf32, #tpu.memory_space<vmem>>, vector<4x1x18xf32>,
    %12 = vector.shape_cast %1 : vector<4x1x1xf32> to vector<4x1x1xf32>
    %13 = vector.broadcast %12 : vector<4x1x1xf32> to vector<4x16x1xf32>
    %c0_15 = arith.constant 0 : index
    %c1_16 = arith.constant 1 : index
    %c0_17 = arith.constant 0 : index
    %14 = vector.load %arg4[%c0_15, %c1_16, %c0_17] : memref<4x18x18xf32, #tpu.memory_space<vmem>>, vector<4x16x1xf32>
    tpu.vector_store %arg4[%c0_15, %c1_16, %c0_17], %13 {strides = array<i32>} : memref<4x18x18xf32, #tpu.memory_space<vmem>>, vector<4x16x1xf32>,
    %c0_18 = arith.constant 0 : index
    %c1_19 = arith.constant 1 : index
    %c17_20 = arith.constant 17 : index
    %15 = vector.load %arg4[%c0_18, %c1_19, %c17_20] : memref<4x18x18xf32, #tpu.memory_space<vmem>>, vector<4x16x1xf32>
    tpu.vector_store %arg4[%c0_18, %c1_19, %c17_20], %13 {strides = array<i32>} : memref<4x18x18xf32, #tpu.memory_space<vmem>>, vector<4x16x1xf32>,
    return
  }
  func.func @transform_0(%arg0: i32) -> (i32, i32, i32) {
    %c0_i32 = arith.constant 0 : i32
    %c0_i32_0 = arith.constant 0 : i32
    %c0_i32_1 = arith.constant 0 : i32
    return %arg0, %c0_i32, %c0_i32_0 : i32, i32, i32
  }
  func.func @transform_1(%arg0: i32) -> (i32, i32, i32) {
    %c0_i32 = arith.constant 0 : i32
    %c0_i32_0 = arith.constant 0 : i32
    %c0_i32_1 = arith.constant 0 : i32
    return %arg0, %c0_i32, %c0_i32_0 : i32, i32, i32
  }
  func.func @transform_2(%arg0: i32) -> (i32, i32, i32) {
    %c0_i32 = arith.constant 0 : i32
    %c0_i32_0 = arith.constant 0 : i32
    %c0_i32_1 = arith.constant 0 : i32
    return %arg0, %c0_i32, %c0_i32_0 : i32, i32, i32
  }
  func.func @transform_3(%arg0: i32) -> (i32, i32, i32) {
    %c0_i32 = arith.constant 0 : i32
    %c0_i32_0 = arith.constant 0 : i32
    %c0_i32_1 = arith.constant 0 : i32
    return %arg0, %c0_i32, %c0_i32_0 : i32, i32, i32
  }
}

</mosaic_0001>

<llo_original>
// kernel: tpu_custom_call.1
$region0: #{tpu_custom_call.1}
  #allocation0 [shape = 'u32[]', space=smem, size = 0x4, offset = 0x4, fixed_abs, tag = 'smem constant byte address 0x4 - core index']
  #allocation1 [shape = 'u32[144,128]{1,0:T(1,128)}', space=vmem, size = 0x12000, scoped, tag = 'internal scratch']
  %s0 = inlined_call_operand.vmem [shape: f32[8,1,1], index: 0, kind: input, shape index: {}]
  %s1 = inlined_call_operand.vmem [shape: f32[8,1,1], index: 1, kind: input, shape index: {}]
  %s2 = inlined_call_operand.hbm [shape: f32[8,16,16], index: 2, kind: input, shape index: {}]
  %s3 = inlined_call_operand.vmem [shape: f32[8,18,18], index: 3, kind: output, shape index: {}]
  %s4 = sld [smem:[#allocation0]]
  $region49: #{tpu_custom_call.1} parent=0
    _
  %s6 = ssub.s32 1, %s4
  %s7 = scalar_select 0, %s6, %s4
  $region1: #{tpu_custom_call.1} parent=0
    #allocation2 [shape = 'u8[65536]{0}', space=vmem, size = 0x10000, scoped, tag = 'input window, operand 2']
    #allocation3 [shape = 's32[2]{0}', space=sflag, size = 0x8, scoped, tag = 'scoped memory for tpu_custom_call.1']
    %8 = vsyncpa [#allocation3], 0
    %s9 = scalar_lea.sflag [#allocation3], 1
    %10 = vsyncpa %s9, 0
    loop: start=0, step=1, limit=4
    $region2: #{tpu_custom_call.1} parent=1 // loop_pre_header
      _
    $region3: #{tpu_custom_call.1} parent=1 // loop_header
      %s12 = sphi 0, %s16
      %p13 = scmp.ge.s32.totalorder %s12, 4
      %s22 = sphi 0, %s24
      %s25 = sphi 0, %s22
      %s26 = sphi 0, %s25
      %s42 = sphi 0, %s26
      %s48 = sphi 0, %s50
      %s51 = sphi 0, %s48
      %s52 = sphi 0, %s51
      %s68 = sphi 0, %s52
      %s74 = sphi 0, %s76
      %s77 = sphi 0, %s74
      %s78 = sphi 0, %s77
      %s94 = sphi 0, %s78
      %s100 = sphi 0, %s102
      %s103 = sphi 0, %s100
      %s104 = sphi 0, %s103
      %s120 = sphi 0, %s104
    $region4: #{tpu_custom_call.1} parent=1 // loop_header_branch
      %15 = sbr.rel (%p13) target = $region8
    $region5: #{tpu_custom_call.1} parent=1 // loop_body
      %s17 = ssub.s32 %s12, 1
      %s18 = ssub.s32 %s12, 2
      %s19 = sadd.s32 %s12, 1
      %s20 = ssub.s32 %s12, %s19
      %p21 = scmp.eq.s32.totalorder %s20, 0
      %s23 = sadd.s32 %s22, 1
      %s24 = scalar_select %p21, %s22, %s23
      %p27 = pneg %p21
      %p28 = scmp.eq.s32.totalorder %s12, 1
      %p29 = por %p27, %p28
      %p30 = scmp.ne.s32.totalorder %s22, %s25
      %p31 = scmp.eq.s32.totalorder %s12, 0
      %p32 = por %p30, %p31
      %p33 = scmp.ne.s32.totalorder %s22, %s25
      %p34 = scmp.eq.s32.totalorder %s17, 1
      %p35 = por %p33, %p34
      %p36 = scmp.ne.s32.totalorder %s25, %s26
      %p37 = scmp.eq.s32.totalorder %s17, 0
      %p38 = por %p36, %p37
      %p39 = scmp.ne.s32.totalorder %s25, %s26
      %p40 = scmp.eq.s32.totalorder %s18, 1
      %p41 = por %p39, %p40
      %p43 = scmp.ne.s32.totalorder %s26, %s42
      %p44 = scmp.eq.s32.totalorder %s18, 0
      %p45 = por %p43, %p44
      %s46 = ssub.s32 %s12, %s19
      %p47 = scmp.eq.s32.totalorder %s46, 0
      %s49 = sadd.s32 %s48, 1
      %s50 = scalar_select %p47, %s48, %s49
      %p53 = pneg %p47
      %p54 = scmp.eq.s32.totalorder %s12, 1
      %p55 = por %p53, %p54
      %p56 = scmp.ne.s32.totalorder %s48, %s51
      %p57 = scmp.eq.s32.totalorder %s12, 0
      %p58 = por %p56, %p57
      %p59 = scmp.ne.s32.totalorder %s48, %s51
      %p60 = scmp.eq.s32.totalorder %s17, 1
      %p61 = por %p59, %p60
      %p62 = scmp.ne.s32.totalorder %s51, %s52
      %p63 = scmp.eq.s32.totalorder %s17, 0
      %p64 = por %p62, %p63
      %p65 = scmp.ne.s32.totalorder %s51, %s52
      %p66 = scmp.eq.s32.totalorder %s18, 1
      %p67 = por %p65, %p66
      %p69 = scmp.ne.s32.totalorder %s52, %s68
      %p70 = scmp.eq.s32.totalorder %s18, 0
      %p71 = por %p69, %p70
      %s72 = ssub.s32 %s12, %s19
      %p73 = scmp.eq.s32.totalorder %s72, 0
      %s75 = sadd.s32 %s74, 1
      %s76 = scalar_select %p73, %s74, %s75
      %p79 = pneg %p73
      %p80 = scmp.eq.s32.totalorder %s12, 1
      %p81 = por %p79, %p80
      %p82 = scmp.ne.s32.totalorder %s74, %s77
      %p83 = scmp.eq.s32.totalorder %s12, 0
      %p84 = por %p82, %p83
      %p85 = scmp.ne.s32.totalorder %s74, %s77
      %p86 = scmp.eq.s32.totalorder %s17, 1
      %p87 = por %p85, %p86
      %p88 = scmp.ne.s32.totalorder %s77, %s78
      %p89 = scmp.eq.s32.totalorder %s17, 0
      %p90 = por %p88, %p89
      %p91 = scmp.ne.s32.totalorder %s77, %s78
      %p92 = scmp.eq.s32.totalorder %s18, 1
      %p93 = por %p91, %p92
      %p95 = scmp.ne.s32.totalorder %s78, %s94
      %p96 = scmp.eq.s32.totalorder %s18, 0
      %p97 = por %p95, %p96
      %s98 = ssub.s32 %s12, %s19
      %p99 = scmp.eq.s32.totalorder %s98, 0
      %s101 = sadd.s32 %s100, 1
      %s102 = scalar_select %p99, %s100, %s101
      %p105 = pneg %p99
      %p106 = scmp.eq.s32.totalorder %s12, 1
      %p107 = por %p105, %p106
      %p108 = scmp.ne.s32.totalorder %s100, %s103
      %p109 = scmp.eq.s32.totalorder %s12, 0
      %p110 = por %p108, %p109
      %p111 = scmp.ne.s32.totalorder %s100, %s103
      %p112 = scmp.eq.s32.totalorder %s17, 1
      %p113 = por %p111, %p112
      %p114 = scmp.ne.s32.totalorder %s103, %s104
      %p115 = scmp.eq.s32.totalorder %s17, 0
      %p116 = por %p114, %p115
      %p117 = scmp.ne.s32.totalorder %s103, %s104
      %p118 = scmp.eq.s32.totalorder %s18, 1
      %p119 = por %p117, %p118
      %p121 = scmp.ne.s32.totalorder %s104, %s120
      %p122 = scmp.eq.s32.totalorder %s18, 0
      %p123 = por %p121, %p122
      %p124 = scmp.le.s32.totalorder 1, %s12
      %p125 = scmp.lt.s32.totalorder %s12, 3
      %p126 = pnand %p124, %p125
      %p127 = pneg %p126
      // Predicated region
      $region9: #{tpu_custom_call.1} parent=5 // pred_check
        _
      $region10: #{tpu_custom_call.1} parent=5 // pred_check_branch
        %129 = sbr.rel (%p126) target = $region12
      $region11: #{tpu_custom_call.1} parent=5 // pred_region
        %s130 = ssub.s32 %s12, 1
      $region12: #{tpu_custom_call.1} parent=5 // pred_fallthru
        _
      %p131 = scmp.lt.s32.totalorder %s12, 2
      // Predicated region
      $region13: #{tpu_custom_call.1} parent=5 // pred_check
        %p132 = pneg %p131
      $region14: #{tpu_custom_call.1} parent=5 // pred_check_branch
        %134 = sbr.rel (%p132) target = $region16
      $region15: #{tpu_custom_call.1} parent=5 // pred_region
        // Predicated region
        $region17: #{tpu_custom_call.1} parent=15 // pred_check
          %p135 = pneg %p32
        $region18: #{tpu_custom_call.1} parent=15 // pred_check_branch
          %137 = sbr.rel (%p135) target = $region20
        $region19: #{tpu_custom_call.1} parent=15 // pred_region
          %s138 = smul.u32 4, %s12
          %p139 = scmp.lt.s32.totalorder %s138, 7
          %s140 = scalar_select %p139, %s138, 7
          %s141 = scalar_lea.vmem %s0, %s140
          %s142 = smul.u32 4, %s12
        $region20: #{tpu_custom_call.1} parent=15 // pred_fallthru
          _
        // Predicated region
        $region21: #{tpu_custom_call.1} parent=15 // pred_check
          %p143 = pneg %p58
        $region22: #{tpu_custom_call.1} parent=15 // pred_check_branch
          %145 = sbr.rel (%p143) target = $region24
        $region23: #{tpu_custom_call.1} parent=15 // pred_region
          %s146 = smul.u32 4, %s12
          %p147 = scmp.lt.s32.totalorder %s146, 7
          %s148 = scalar_select %p147, %s146, 7
          %s149 = scalar_lea.vmem %s1, %s148
          %s150 = smul.u32 4, %s12
        $region24: #{tpu_custom_call.1} parent=15 // pred_fallthru
          _
        // Predicated region
        $region25: #{tpu_custom_call.1} parent=15 // pred_check
          %p151 = pneg %p84
        $region26: #{tpu_custom_call.1} parent=15 // pred_check_branch
          %153 = sbr.rel (%p151) target = $region28
        $region27: #{tpu_custom_call.1} parent=15 // pred_region
          %s154 = sand.u32 %s74, 1
          %s155 = scalar_lea.sflag [#allocation3], %s154
          %s156 = sand.u32 %s74, 1
          %s157 = smul.addr %s156, 64
          %s158 = scalar_lea.vmem [#allocation2], %s157
          %s159 = smul.u32 4, %s12
          %s161 = ssub.s32 1024, 1024
          %162 = vsyncadd %s155, %s161
          %s163 = smul.addr %s159, 2
          %s164 = smul.addr %s163, 128
          %s165 = scalar_lea.hbm %s2, %s164
          %s166 = sshll.u32 %s158, 4
          %s167 = int_to_ptr.vmem [resolvable:$true] %s166
          %172 = dma.hbm_to_vmem [thread:$0]  %s165, 1024, %s167, %s155, 128, 128, 8
        $region28: #{tpu_custom_call.1} parent=15 // pred_fallthru
          _
      $region16: #{tpu_custom_call.1} parent=5 // pred_fallthru
        _
      %p173 = scmp.le.s32.totalorder 1, %s12
      %p174 = scmp.lt.s32.totalorder %s12, 3
      %p175 = pnand %p173, %p174
      %p176 = pneg %p175
      // Predicated region
      $region29: #{tpu_custom_call.1} parent=5 // pred_check
        _
      $region30: #{tpu_custom_call.1} parent=5 // pred_check_branch
        %178 = sbr.rel (%p175) target = $region32
      $region31: #{tpu_custom_call.1} parent=5 // pred_region
        %s179 = ssub.s32 %s12, 1
        %s180 = sand.u32 %s77, 1
        %s181 = scalar_lea.sflag [#allocation3], %s180
        %s182 = sand.u32 %s77, 1
        %s183 = smul.addr %s182, 64
        %s184 = scalar_lea.vmem [#allocation2], %s183
        // Predicated region
        $region33: #{tpu_custom_call.1} parent=31 // pred_check
          %p185 = pneg %p90
        $region34: #{tpu_custom_call.1} parent=31 // pred_check_branch
          %187 = sbr.rel (%p185) target = $region36
        $region35: #{tpu_custom_call.1} parent=31 // pred_region
          %188 = dma.done %s181, 1024
        $region36: #{tpu_custom_call.1} parent=31 // pred_fallthru
          _
        %s189 = smul.u32 4, %s17
        %p190 = scmp.lt.s32.totalorder %s189, 7
        %s191 = scalar_select %p190, %s189, 7
        %s192 = scalar_lea.vmem %s0, %s191
        %p193 = pneg %p38
        %p194 = pneg %p35
        %s195 = smul.u32 4, %s17
        %p196 = scmp.lt.s32.totalorder %s195, 7
        %s197 = scalar_select %p196, %s195, 7
        %s198 = scalar_lea.vmem %s1, %s197
        %p199 = pneg %p64
        %p200 = pneg %p61
        %s201 = sand.u32 %s77, 1
        %s202 = scalar_lea.sflag [#allocation3], %s201
        %s203 = sand.u32 %s77, 1
        %s204 = smul.addr %s203, 64
        %s205 = scalar_lea.vmem [#allocation2], %s204
        %p206 = pneg %p90
        %p207 = pneg %p87
        %p208 = pneg %p116
        %p209 = pneg %p113
        %s210 = smul.u32 4, %s17
        %p211 = scmp.lt.s32.totalorder %s210, 7
        %s212 = scalar_select %p211, %s210, 7
        %s213 = smul.addr %s212, 3
        %s214 = smul.addr %s213, 8
        %s215 = scalar_lea.vmem %s3, %s214
        %s216 = smul.u32 4, %s17
        %p217 = scmp.lt.s32.totalorder %s216, 7
        %s218 = scalar_select %p217, %s216, 7
        %s219 = scalar_lea.vmem %s0, %s218
        %s220 = smul.u32 4, %s17
        %s221 = smul.u32 4, %s17
        %p222 = scmp.lt.s32.totalorder %s221, 7
        %s223 = scalar_select %p222, %s221, 7
        %s224 = scalar_lea.vmem %s1, %s223
        %s225 = smul.u32 4, %s17
        %s226 = smul.u32 4, %s17
        %s227 = smul.u32 4, %s17
        %p228 = scmp.lt.s32.totalorder %s227, 7
        %s229 = scalar_select %p228, %s227, 7
        %s230 = smul.addr %s229, 3
        %s231 = smul.addr %s230, 8
        %s232 = scalar_lea.vmem %s3, %s231
        %s233 = smul.u32 4, %s17
        %v234 = vld [vmem:[%s219] sm:$0x1]
        %v235 = vld [vmem:[%s219 + $0x1] sm:$0x1]
        %v236 = vld [vmem:[%s219 + $0x2] sm:$0x1]
        %v237 = vld [vmem:[%s219 + $0x3] sm:$0x1]
        %v238 = vld [vmem:[%s224] sm:$0x1]
        %v239 = vld [vmem:[%s224 + $0x1] sm:$0x1]
        %v240 = vld [vmem:[%s224 + $0x2] sm:$0x1]
        %v241 = vld [vmem:[%s224 + $0x3] sm:$0x1]
        %v242 = vld [vmem:[%s184] sm:$0xff]
        %v243 = vld [vmem:[%s184 + $0x8] sm:$0xff]
        %v244 = vld [vmem:[%s184 + $0x10] sm:$0xff]
        %v245 = vld [vmem:[%s184 + $0x18] sm:$0xff]
        %v246 = vld [vmem:[%s184 + $0x20] sm:$0xff]
        %v247 = vld [vmem:[%s184 + $0x28] sm:$0xff]
        %v248 = vld [vmem:[%s184 + $0x30] sm:$0xff]
        %v249 = vld [vmem:[%s184 + $0x38] sm:$0xff]
        %v254 = vlaneseq
        %v255 = vshrl.u32 %v254, 7
        %v256 = vsub.s32 0, %v255
        %v257 = vrot.slane %v234, %v256
        %v258 = vlaneseq
        %v259 = vshrl.u32 %v258, 7
        %v260 = vsub.s32 0, %v259
        %v261 = vrot.slane %v235, %v260
        %v262 = vlaneseq
        %v263 = vshrl.u32 %v262, 7
        %v264 = vsub.s32 0, %v263
        %v265 = vrot.slane %v236, %v264
        %v266 = vlaneseq
        %v267 = vshrl.u32 %v266, 7
        %v268 = vsub.s32 0, %v267
        %v269 = vrot.slane %v237, %v268
        %270 = vset.pattern.permute.xlu0 0
        %271 = vperm.xlu0 %270, %v257
        %v272 = vpop.permute.xlu0 %271
        %274 = vset.pattern.permute.xlu0 0
        %275 = vperm.xlu0 %274, %v261
        %v276 = vpop.permute.xlu0 %275
        %278 = vset.pattern.permute.xlu0 0
        %279 = vperm.xlu0 %278, %v265
        %v280 = vpop.permute.xlu0 %279
        %282 = vset.pattern.permute.xlu0 0
        %283 = vperm.xlu0 %282, %v269
        %v284 = vpop.permute.xlu0 %283
        %v286 = vmul.f32 %v242, %v272
        %v287 = vmul.f32 %v243, %v272
        %v288 = vmul.f32 %v244, %v276
        %v289 = vmul.f32 %v245, %v276
        %v290 = vmul.f32 %v246, %v280
        %v291 = vmul.f32 %v247, %v280
        %v292 = vmul.f32 %v248, %v284
        %v293 = vmul.f32 %v249, %v284
        %v298 = vlaneseq
        %v299 = vshrl.u32 %v298, 7
        %v300 = vsub.s32 0, %v299
        %v301 = vrot.slane %v238, %v300
        %v302 = vlaneseq
        %v303 = vshrl.u32 %v302, 7
        %v304 = vsub.s32 0, %v303
        %v305 = vrot.slane %v239, %v304
        %v306 = vlaneseq
        %v307 = vshrl.u32 %v306, 7
        %v308 = vsub.s32 0, %v307
        %v309 = vrot.slane %v240, %v308
        %v310 = vlaneseq
        %v311 = vshrl.u32 %v310, 7
        %v312 = vsub.s32 0, %v311
        %v313 = vrot.slane %v241, %v312
        %314 = vset.pattern.permute.xlu0 0
        %315 = vperm.xlu0 %314, %v301
        %v316 = vpop.permute.xlu0 %315
        %318 = vset.pattern.permute.xlu0 0
        %319 = vperm.xlu0 %318, %v305
        %v320 = vpop.permute.xlu0 %319
        %322 = vset.pattern.permute.xlu0 0
        %323 = vperm.xlu0 %322, %v309
        %v324 = vpop.permute.xlu0 %323
        %326 = vset.pattern.permute.xlu0 0
        %327 = vperm.xlu0 %326, %v313
        %v328 = vpop.permute.xlu0 %327
        %v330 = vadd.f32 %v286, %v316
        %v331 = vadd.f32 %v287, %v316
        %v332 = vadd.f32 %v288, %v320
        %v333 = vadd.f32 %v289, %v320
        %v334 = vadd.f32 %v290, %v324
        %v335 = vadd.f32 %v291, %v324
        %v336 = vadd.f32 %v292, %v328
        %v337 = vadd.f32 %v293, %v328
        %346 = vrot.lane.b32.xlu0 %v330, 1
        %v347 = vpop.permute.xlu0 %346
        %348 = vrot.lane.b32.xlu0 %v331, 1
        %v349 = vpop.permute.xlu0 %348
        %350 = vrot.lane.b32.xlu0 %v332, 1
        %v351 = vpop.permute.xlu0 %350
        %352 = vrot.lane.b32.xlu0 %v333, 1
        %v353 = vpop.permute.xlu0 %352
        %354 = vrot.lane.b32.xlu0 %v334, 1
        %v355 = vpop.permute.xlu0 %354
        %356 = vrot.lane.b32.xlu0 %v335, 1
        %v357 = vpop.permute.xlu0 %356
        %358 = vrot.lane.b32.xlu0 %v336, 1
        %v359 = vpop.permute.xlu0 %358
        %360 = vrot.lane.b32.xlu0 %v337, 1
        %v361 = vpop.permute.xlu0 %360
        %vm370 = vcmask 138248
        %371 = vst.msk [vmem:[%s232 + $0x1] sm:$0xff] %vm370, %v347
        %372 = vst.msk [vmem:[%s232 + $0x9] sm:$0xff] %vm370, %v349
        %373 = vst.msk [vmem:[%s232 + $0x19] sm:$0xff] %vm370, %v351
        %374 = vst.msk [vmem:[%s232 + $0x21] sm:$0xff] %vm370, %v353
        %375 = vst.msk [vmem:[%s232 + $0x31] sm:$0xff] %vm370, %v355
        %376 = vst.msk [vmem:[%s232 + $0x39] sm:$0xff] %vm370, %v357
        %377 = vst.msk [vmem:[%s232 + $0x49] sm:$0xff] %vm370, %v359
        %378 = vst.msk [vmem:[%s232 + $0x51] sm:$0xff] %vm370, %v361
        %379 = vset.pattern.permute.xlu0 0
        %380 = vperm.xlu0 %379, %v238
        %v381 = vpop.permute.xlu0 %380
        %v383 = vlaneseq
        %v384 = vshrl.u32 %v383, 7
        %v385 = vsub.s32 0, %v384
        %v386 = vrot.slane %v381, %v385
        %387 = vset.pattern.permute.xlu0 0
        %388 = vperm.xlu0 %387, %v239
        %v389 = vpop.permute.xlu0 %388
        %v391 = vlaneseq
        %v392 = vshrl.u32 %v391, 7
        %v393 = vsub.s32 0, %v392
        %v394 = vrot.slane %v389, %v393
        %395 = vset.pattern.permute.xlu0 0
        %396 = vperm.xlu0 %395, %v240
        %v397 = vpop.permute.xlu0 %396
        %v399 = vlaneseq
        %v400 = vshrl.u32 %v399, 7
        %v401 = vsub.s32 0, %v400
        %v402 = vrot.slane %v397, %v401
        %403 = vset.pattern.permute.xlu0 0
        %404 = vperm.xlu0 %403, %v241
        %v405 = vpop.permute.xlu0 %404
        %v407 = vlaneseq
        %v408 = vshrl.u32 %v407, 7
        %v409 = vsub.s32 0, %v408
        %v410 = vrot.slane %v405, %v409
        %vm411 = vcmask 139264
        %412 = vst.msk [vmem:[%s232] sm:$0x1] %vm411, %v386
        %413 = vst.msk [vmem:[%s232 + $0x18] sm:$0x1] %vm411, %v394
        %414 = vst.msk [vmem:[%s232 + $0x30] sm:$0x1] %vm411, %v402
        %415 = vst.msk [vmem:[%s232 + $0x48] sm:$0x1] %vm411, %v410
        %416 = vst.msk [vmem:[%s232 + $0x11] sm:$0x1] %vm411, %v386
        %417 = vst.msk [vmem:[%s232 + $0x29] sm:$0x1] %vm411, %v394
        %418 = vst.msk [vmem:[%s232 + $0x41] sm:$0x1] %vm411, %v402
        %419 = vst.msk [vmem:[%s232 + $0x59] sm:$0x1] %vm411, %v410
        %vm424 = vcmask 7168
        %425 = vst.msk [vmem:[%s232 + $0x1] sm:$0xff] %vm424, %v301
        %426 = vst.msk [vmem:[%s232 + $0x9] sm:$0xff] %vm424, %v301
        %427 = vst.msk [vmem:[%s232 + $0x19] sm:$0xff] %vm424, %v305
        %428 = vst.msk [vmem:[%s232 + $0x21] sm:$0xff] %vm424, %v305
        %429 = vst.msk [vmem:[%s232 + $0x31] sm:$0xff] %vm424, %v309
        %430 = vst.msk [vmem:[%s232 + $0x39] sm:$0xff] %vm424, %v309
        %431 = vst.msk [vmem:[%s232 + $0x49] sm:$0xff] %vm424, %v313
        %432 = vst.msk [vmem:[%s232 + $0x51] sm:$0xff] %vm424, %v313
        %433 = vrot.lane.b32.xlu0 %v301, 17
        %v434 = vpop.permute.xlu0 %433
        %435 = vrot.lane.b32.xlu0 %v305, 17
        %v436 = vpop.permute.xlu0 %435
        %437 = vrot.lane.b32.xlu0 %v309, 17
        %v438 = vpop.permute.xlu0 %437
        %439 = vrot.lane.b32.xlu0 %v313, 17
        %v440 = vpop.permute.xlu0 %439
        %vm445 = vcmask 146568
        %446 = vst.msk [vmem:[%s232 + $0x1] sm:$0xff] %vm445, %v434
        %447 = vst.msk [vmem:[%s232 + $0x9] sm:$0xff] %vm445, %v434
        %448 = vst.msk [vmem:[%s232 + $0x19] sm:$0xff] %vm445, %v436
        %449 = vst.msk [vmem:[%s232 + $0x21] sm:$0xff] %vm445, %v436
        %450 = vst.msk [vmem:[%s232 + $0x31] sm:$0xff] %vm445, %v438
        %451 = vst.msk [vmem:[%s232 + $0x39] sm:$0xff] %vm445, %v438
        %452 = vst.msk [vmem:[%s232 + $0x49] sm:$0xff] %vm445, %v440
        %453 = vst.msk [vmem:[%s232 + $0x51] sm:$0xff] %vm445, %v440
        %s454 = smul.u32 4, %s17
        %p455 = scmp.lt.s32.totalorder %s454, 7
        %s456 = scalar_select %p455, %s454, 7
        %s457 = smul.addr %s456, 3
        %s458 = smul.addr %s457, 8
        %s459 = scalar_lea.vmem %s3, %s458
        // Predicated region
        $region37: #{tpu_custom_call.1} parent=31 // pred_check
          %p460 = pneg %p113
        $region38: #{tpu_custom_call.1} parent=31 // pred_check_branch
          %462 = sbr.rel (%p460) target = $region40
        $region39: #{tpu_custom_call.1} parent=31 // pred_region
          %s463 = smul.u32 4, %s17
        $region40: #{tpu_custom_call.1} parent=31 // pred_fallthru
          _
      $region32: #{tpu_custom_call.1} parent=5 // pred_fallthru
        _
      %p464 = scmp.le.s32.totalorder 2, %s12
      // Predicated region
      $region41: #{tpu_custom_call.1} parent=5 // pred_check
        %p465 = pneg %p464
      $region42: #{tpu_custom_call.1} parent=5 // pred_check_branch
        %467 = sbr.rel (%p465) target = $region44
      $region43: #{tpu_custom_call.1} parent=5 // pred_region
        %s468 = ssub.s32 %s12, 2
        // Predicated region
        $region45: #{tpu_custom_call.1} parent=43 // pred_check
          %p469 = pneg %p119
        $region46: #{tpu_custom_call.1} parent=43 // pred_check_branch
          %471 = sbr.rel (%p469) target = $region48
        $region47: #{tpu_custom_call.1} parent=43 // pred_region
          %s472 = smul.u32 4, %s18
          %p473 = scmp.lt.s32.totalorder %s472, 7
          %s474 = scalar_select %p473, %s472, 7
          %s475 = smul.addr %s474, 3
          %s476 = smul.addr %s475, 8
          %s477 = scalar_lea.vmem %s3, %s476
        $region48: #{tpu_custom_call.1} parent=43 // pred_fallthru
          _
      $region44: #{tpu_custom_call.1} parent=5 // pred_fallthru
        _
    $region6: #{tpu_custom_call.1} parent=1 // loop_footer
      %s16 = sadd.s32 1, %s12
    $region7: #{tpu_custom_call.1} parent=1 // loop_footer_branch
      %11 = sbr.rel target = $region3
    $region8: #{tpu_custom_call.1} parent=1 // loop_exit
      _
    %478 = vsyncpa [#allocation3], 1
    %s479 = scalar_lea.sflag [#allocation3], 1
    %480 = vsyncpa %s479, 1

</llo_original>
